<compile_context>
chip_gen: v5e
topology: v5e:2x2
jax: 0.10.0
libtpu: 0.0.40
codegen_flags: <defaults>
</compile_context>

<pallas_src>
import jax
import jax.numpy as jnp
from jax.experimental import pallas as pl
from jax.experimental.pallas import tpu as pltpu


# ---------------------------------------------------------------- VMEM budget / tile selection
def _vmem_budget_bytes():
    """Generation-aware VMEM budget: ~48 MiB on v7x (64 MiB phys), up to 96 MiB on v5e/v6e."""
    try:
        info = pltpu.get_tpu_info()
        cap = int(getattr(info, "vmem_capacity_bytes", 0) or 0)
    except Exception:
        cap = 0
    if cap <= 0:
        cap = 64 * 1024 * 1024          # conservative fallback (v7x-sized)
    return min((cap * 3) // 4, 96 * 1024 * 1024)


def _pick_th(N, H, Wp, Cin, Ct, vmem_budget):
    """Pick the h-tile height: big lane-dense tiles, but >=4 grid steps and VMEM-safe."""
    def vmem_est(th):
        lp = (th + 3) * Wp
        tm = th * Wp
        # 2x for the double-buffered gridded blocks (bf16 in, bf16 out, f32 mask) plus the f32
        # accumulator working set and the (tiny) resident weights.
        return (2 * (Cin * lp * 2 + Ct * tm * 2 + tm * 4)
                + Ct * tm * 4 + Ct * Cin * 9 * 4)

    def nblocks(th):
        return N * pl.cdiv(H, th)

    def waste_ok(th):                    # padded-row waste <= 1/8 of the image height
        return (pl.cdiv(H, th) * th - H) * 8 <= H

    feas = [t for t in range(H, 0, -1) if vmem_est(t) <= vmem_budget] or [1]
    for cap_tm, min_nb in ((2048, 4), (4096, 2)):
        for t in feas:                   # descending -> largest qualifying tile first
            if t * Wp <= cap_tm and nblocks(t) >= min_nb and waste_ok(t):
                return t
    return feas[-1]                      # smallest feasible tile (degenerate shapes)


def _compiler_params(budget):
    return pltpu.CompilerParams(
        dimension_semantics=("parallel", "parallel"),   # (batch, h-block): megacore-shardable
        vmem_limit_bytes=int(budget),
    )


# ---------------------------------------------------------------- in-kernel im2col
def _build_patches(x_ref, Wp, TM):
    """9 shifted lane-slices of the flattened haloed block -> (9*Cin, TM) f32 patch matrix."""
    slabs = []
    for kh in range(3):
        for kw in range(3):
            off = kh * Wp + kw
            slabs.append(x_ref[0, 0, :, off:off + TM].astype(jnp.float32))
    return jnp.concatenate(slabs, axis=0)


# ---------------------------------------------------------------- pass 1: conv -> BN partial stats
def _conv_stats(xb, w_cm, b_cm, mask, *, N, nh, Ct, TM, Wp, budget):
    Cin, Lp = xb.shape[2], xb.shape[3]
    K = w_cm.shape[1]

    def kernel(x_ref, w_ref, b_ref, m_ref, stat_ref):
        patches = _build_patches(x_ref, Wp, TM)                       # (K, TM) f32
        o = jnp.dot(w_ref[...], patches,
                    preferred_element_type=jnp.float32) + b_ref[...]  # (Ct, TM)
        msk = m_ref[0]                                                # (1, TM): valid cols/rows
        om = o * msk
        s = jnp.sum(om, axis=-1, keepdims=True)                       # (Ct, 1)  sum
        q = jnp.sum(o * om, axis=-1, keepdims=True)                   # (Ct, 1)  sum of squares
        stat_ref[0, 0] = jnp.concatenate([s, q], axis=-1)             # single merged (Ct, 2) block

    return pl.pallas_call(
        kernel,
        grid=(N, nh),
        in_specs=[
            pl.BlockSpec((1, 1, Cin, Lp), lambda n, h: (n, h, 0, 0)),  # haloed input block (bf16)
            pl.BlockSpec((Ct, K), lambda n, h: (0, 0)),                # weights, resident
            pl.BlockSpec((Ct, 1), lambda n, h: (0, 0)),                # conv bias, resident
            pl.BlockSpec((1, 1, TM), lambda n, h: (h, 0, 0)),          # per-h-block validity mask
        ],
        out_specs=pl.BlockSpec((1, 1, Ct, 2), lambda n, h: (n, h, 0, 0)),
        out_shape=jax.ShapeDtypeStruct((N, nh, Ct, 2), jnp.float32),
        compiler_params=_compiler_params(budget),
    )(xb, w_cm, b_cm, mask)


# ---------------------------------------------------------------- pass 2: conv recompute + BN + PReLU
def _conv_bn_prelu(xb, w_cm, scale_c, shift_c, alpha, *, N, nh, Ct, TM, Wp, budget):
    Cin, Lp = xb.shape[2], xb.shape[3]
    K = w_cm.shape[1]

    def kernel(x_ref, w_ref, sc_ref, sh_ref, a_ref, o_ref):
        patches = _build_patches(x_ref, Wp, TM)                       # (K, TM) f32
        o = jnp.dot(w_ref[...], patches, preferred_element_type=jnp.float32)
        z = o * sc_ref[...] + sh_ref[...]          # BN scale/shift (conv bias folded into shift)
        a = a_ref[0]
        y = jnp.where(z > 0, z, a * z)             # PReLU (shared alpha)
        o_ref[0, 0] = y.astype(o_ref.dtype)        # single bf16 write of the activation slab

    return pl.pallas_call(
        kernel,
        grid=(N, nh),
        in_specs=[
            pl.BlockSpec((1, 1, Cin, Lp), lambda n, h: (n, h, 0, 0)),
            pl.BlockSpec((Ct, K), lambda n, h: (0, 0)),
            pl.BlockSpec((Ct, 1), lambda n, h: (0, 0)),
            pl.BlockSpec((Ct, 1), lambda n, h: (0, 0)),
            pl.BlockSpec(memory_space=pltpu.MemorySpace.SMEM),         # PReLU alpha scalar
        ],
        out_specs=pl.BlockSpec((1, 1, Ct, TM), lambda n, h: (n, h, 0, 0)),
        out_shape=jax.ShapeDtypeStruct((N, nh, Ct, TM), jnp.bfloat16),
        compiler_params=_compiler_params(budget),
    )(xb, w_cm, scale_c, shift_c, alpha)


# ---------------------------------------------------------------- PSBlock forward
def ps_block_forward(x, conv_w, conv_b, bn_gamma, bn_beta, prelu_alpha, scale_factor, eps=1e-5):
    """x: (N, Cin, H, W) f32.  conv_w: (Cout*r^2, Cin, 3, 3).  Returns (N, Cout, H*r, W*r) f32."""
    N, Cin, H, W = x.shape
    Ct = conv_w.shape[0]
    r = scale_factor
    Cout = Ct // (r * r)
    Wp = W + 2
    K = Cin * 9

    budget = _vmem_budget_bytes()
    TH = _pick_th(N, H, Wp, Cin, Ct, budget)
    nh = pl.cdiv(H, TH)
    Hpad = nh * TH                                  # ragged H handled via padded, masked rows
    TM = TH * Wp                                    # lane width of one block (junk cols included)
    Lp = (TH + 3) * Wp                              # haloed, flattened block length
    Hpt = Hpad + 3                                  # padded image height (1 top + 2.. bottom)

    # ---- prep (XLA, ~1.1x input traffic): pad, bf16-cast, gather haloed h-blocks, flatten rows
    xp = jnp.pad(x, ((0, 0), (0, 0), (1, Hpad - H + 2), (1, 1))).astype(jnp.bfloat16)
    xpf = xp.reshape(N, Cin * Hpt, Wp)
    gidx = (jnp.arange(Cin)[None, :, None] * Hpt
            + jnp.arange(nh)[:, None, None] * TH
            + jnp.arange(TH + 3)[None, None, :])                      # (nh, Cin, TH+3)
    xb = xpf[:, gidx, :].reshape(N, nh, Cin, Lp)                      # (N, nh, Cin, Lp) bf16

    # conv weights in (c, kh, kw, cin) column order (matches the in-kernel patch concat order)
    w_cm = conv_w.transpose(0, 2, 3, 1).reshape(Ct, K).astype(jnp.float32)
    b_cm = conv_b.reshape(Ct, 1).astype(jnp.float32)

    # per-h-block validity mask: drop the junk columns (w >= W) and any padded rows (row >= H)
    rows = jnp.arange(nh)[:, None] * TH + (jnp.arange(TM) // Wp)[None, :]
    cols = (jnp.arange(TM) % Wp)[None, :]
    mask = ((rows < H) & (cols < W)).astype(jnp.float32)[:, None, :]  # (nh, 1, TM)

    # ---- pass 1: conv matmul from in-kernel patches -> tiny per-block BN partial stats
    stats = _conv_stats(xb, w_cm, b_cm, mask,
                        N=N, nh=nh, Ct=Ct, TM=TM, Wp=Wp, budget=budget)

    # ---- finalize BatchNorm batch statistics (tiny, in JAX).  BN channel c pools the r^2 conv
    #      channels [c*r^2, (c+1)*r^2) over all N*H*W positions == the post-shuffle reduction.
    tot = stats.sum(axis=(0, 1))                                      # (Ct, 2)
    count = jnp.float32(N * H * W * r * r)                            # elements per BN channel
    g_sum = tot[:, 0].reshape(Cout, r * r).sum(-1)
    g_sq = tot[:, 1].reshape(Cout, r * r).sum(-1)
    mean = g_sum / count
    var = jnp.maximum(g_sq / count - mean * mean, 0.0)                # biased var (torch BN train)
    inv_std = jax.lax.rsqrt(var + eps)
    scale_g = bn_gamma.astype(jnp.float32) * inv_std
    shift_g = bn_beta.astype(jnp.float32) - mean * scale_g
    scale_c = jnp.repeat(scale_g, r * r).reshape(Ct, 1)
    shift_c = jnp.repeat(shift_g, r * r).reshape(Ct, 1) + scale_c * b_cm   # fold conv bias in
    # TODO(synk): BatchNorm2d running_mean/running_var updates (training side effect) are not
    #             produced; forward output matches training-mode batch statistics.
    # TODO(synk): per-channel PReLU (num_parameters=C) not handled; nn.PReLU() default is 1 alpha.

    # ---- pass 2: recompute conv (MXU is idle, HBM is the bottleneck), BN+PReLU epilogue,
    #      write the activation slab exactly once, in bf16.
    slab = _conv_bn_prelu(xb, w_cm, scale_c, shift_c,
                          prelu_alpha.reshape(1).astype(jnp.float32),
                          N=N, nh=nh, Ct=Ct, TM=TM, Wp=Wp, budget=budget)

    # ---- PixelShuffle + junk-column/row drop: one fused XLA slice+transpose over the bf16 slab.
    # TODO(synk): fold this permutation into the pass-2 output (strided/interleaved stores) to
    #             remove the last extra HBM pass.
    slab6 = slab.reshape(N, nh, Cout, r, r, TH, Wp)[..., :W]          # (N, nh, Cout, r, r, TH, W)
    out = (slab6.transpose(0, 2, 1, 5, 3, 6, 4)                       # (N, Cout, nh, TH, r, W, r)
                 .reshape(N, Cout, Hpad * r, W * r)[:, :, :H * r, :]
                 .astype(jnp.float32))
    return out


# ---------------------------------------------------------------- pure-JAX reference
def _reference(x, conv_w, conv_b, gamma, beta, alpha, r, eps=1e-5):
    conv = jax.lax.conv_general_dilated(
        x, conv_w, window_strides=(1, 1), padding=((1, 1), (1, 1)),
        dimension_numbers=("NCHW", "OIHW", "NCHW"))
    conv = conv + conv_b.reshape(1, -1, 1, 1)
    N, Ct, H, W = conv.shape
    C = Ct // (r * r)
    ps = (conv.reshape(N, C, r, r, H, W)
              .transpose(0, 1, 4, 2, 5, 3)
              .reshape(N, C, H * r, W * r))
    mean = ps.mean(axis=(0, 2, 3), keepdims=True)
    var = ps.var(axis=(0, 2, 3), keepdims=True)      # biased
    xhat = (ps - mean) * jax.lax.rsqrt(var + eps)
    y = gamma.reshape(1, -1, 1, 1) * xhat + beta.reshape(1, -1, 1, 1)
    return jnp.where(y > 0, y, alpha * y)


if __name__ == "__main__":
    # Small, module-consistent shapes: input_size=4, output_size=4, scale_factor=2
    N, Cin, H, W = 2, 4, 16, 16
    output_size, scale = 4, 2
    Cout_total = output_size * scale ** 2

    key = jax.random.PRNGKey(0)
    kx, kw, kb = jax.random.split(key, 3)

    x = jax.random.normal(kx, (N, Cin, H, W), dtype=jnp.float32)
    conv_w = 0.05 * jax.random.normal(kw, (Cout_total, Cin, 3, 3), dtype=jnp.float32)
    conv_b = 0.01 * jax.random.normal(kb, (Cout_total,), dtype=jnp.float32)
    bn_gamma = jnp.ones((output_size,), dtype=jnp.float32)        # BatchNorm2d default weight
    bn_beta = jnp.zeros((output_size,), dtype=jnp.float32)        # BatchNorm2d default bias
    prelu_alpha = jnp.full((1,), 0.25, dtype=jnp.float32)         # PReLU default

    fwd = jax.jit(ps_block_forward, static_argnums=(6,))
    out = fwd(x, conv_w, conv_b, bn_gamma, bn_beta, prelu_alpha, scale)
    jax.block_until_ready(out)
    assert out.shape == (N, output_size, H * scale, W * scale)

    ref = _reference(x, conv_w, conv_b, bn_gamma, bn_beta, prelu_alpha, scale)
    err = float(jnp.max(jnp.abs(out - ref)))
    assert err < 5e-2, f"max abs err vs reference too large: {err}"

    print("KERNEL_OK")
</pallas_src>

<mosaic_0001>
module attributes {stable_mosaic.version = 11 : i64} {
  func.func @kernel(%arg0: i32, %arg1: i32, %arg2: memref<1x1x4x216xbf16, #tpu.memory_space<vmem>>, %arg3: memref<16x36xf32, #tpu.memory_space<vmem>>, %arg4: memref<16x1xf32, #tpu.memory_space<vmem>>, %arg5: memref<1x1x162xf32, #tpu.memory_space<vmem>>, %arg6: memref<1x1x16x2xf32, #tpu.memory_space<vmem>>) attributes {dimension_semantics = [#tpu.dimension_semantics<parallel>, #tpu.dimension_semantics<parallel>], iteration_bounds = array<i64: 2, 2>, scalar_prefetch = 0 : i64, scratch_operands = 0 : i64, tpu.core_type = #tpu.core_type<tc>, window_params = [{transform_indices = @transform_0, window_bounds = array<i64: 1, 1, 4, 216>}, {pipeline_mode = #tpu.pipeline_mode<synchronous>, transform_indices = @transform_1, window_bounds = array<i64: 16, 36>}, {pipeline_mode = #tpu.pipeline_mode<synchronous>, transform_indices = @transform_2, window_bounds = array<i64: 16, 1>}, {transform_indices = @transform_3, window_bounds = array<i64: 1, 1, 162>}, {transform_indices = @transform_4, window_bounds = array<i64: 1, 1, 16, 2>}]} {
    %c0 = arith.constant 0 : index
    %c0_0 = arith.constant 0 : index
    %c0_1 = arith.constant 0 : index
    %c0_2 = arith.constant 0 : index
    %0 = vector.load %arg2[%c0, %c0_0, %c0_1, %c0_2] : memref<1x1x4x216xbf16, #tpu.memory_space<vmem>>, vector<1x1x4x162xbf16>
    %1 = vector.shape_cast %0 : vector<1x1x4x162xbf16> to vector<4x162xbf16>
    %2 = arith.extf %1 : vector<4x162xbf16> to vector<4x162xf32>
    %c0_3 = arith.constant 0 : index
    %c0_4 = arith.constant 0 : index
    %c0_5 = arith.constant 0 : index
    %c1 = arith.constant 1 : index
    %3 = vector.load %arg2[%c0_3, %c0_4, %c0_5, %c1] : memref<1x1x4x216xbf16, #tpu.memory_space<vmem>>, vector<1x1x4x162xbf16>
    %4 = vector.shape_cast %3 : vector<1x1x4x162xbf16> to vector<4x162xbf16>
    %5 = arith.extf %4 : vector<4x162xbf16> to vector<4x162xf32>
    %c0_6 = arith.constant 0 : index
    %c0_7 = arith.constant 0 : index
    %c0_8 = arith.constant 0 : index
    %c2 = arith.constant 2 : index
    %6 = vector.load %arg2[%c0_6, %c0_7, %c0_8, %c2] : memref<1x1x4x216xbf16, #tpu.memory_space<vmem>>, vector<1x1x4x162xbf16>
    %7 = vector.shape_cast %6 : vector<1x1x4x162xbf16> to vector<4x162xbf16>
    %8 = arith.extf %7 : vector<4x162xbf16> to vector<4x162xf32>
    %c0_9 = arith.constant 0 : index
    %c0_10 = arith.constant 0 : index
    %c0_11 = arith.constant 0 : index
    %c18 = arith.constant 18 : index
    %9 = vector.load %arg2[%c0_9, %c0_10, %c0_11, %c18] : memref<1x1x4x216xbf16, #tpu.memory_space<vmem>>, vector<1x1x4x162xbf16>
    %10 = vector.shape_cast %9 : vector<1x1x4x162xbf16> to vector<4x162xbf16>
    %11 = arith.extf %10 : vector<4x162xbf16> to vector<4x162xf32>
    %c0_12 = arith.constant 0 : index
    %c0_13 = arith.constant 0 : index
    %c0_14 = arith.constant 0 : index
    %c19 = arith.constant 19 : index
    %12 = vector.load %arg2[%c0_12, %c0_13, %c0_14, %c19] : memref<1x1x4x216xbf16, #tpu.memory_space<vmem>>, vector<1x1x4x162xbf16>
    %13 = vector.shape_cast %12 : vector<1x1x4x162xbf16> to vector<4x162xbf16>
    %14 = arith.extf %13 : vector<4x162xbf16> to vector<4x162xf32>
    %c0_15 = arith.constant 0 : index
    %c0_16 = arith.constant 0 : index
    %c0_17 = arith.constant 0 : index
    %c20 = arith.constant 20 : index
    %15 = vector.load %arg2[%c0_15, %c0_16, %c0_17, %c20] : memref<1x1x4x216xbf16, #tpu.memory_space<vmem>>, vector<1x1x4x162xbf16>
    %16 = vector.shape_cast %15 : vector<1x1x4x162xbf16> to vector<4x162xbf16>
    %17 = arith.extf %16 : vector<4x162xbf16> to vector<4x162xf32>
    %c0_18 = arith.constant 0 : index
    %c0_19 = arith.constant 0 : index
    %c0_20 = arith.constant 0 : index
    %c36 = arith.constant 36 : index
    %18 = vector.load %arg2[%c0_18, %c0_19, %c0_20, %c36] : memref<1x1x4x216xbf16, #tpu.memory_space<vmem>>, vector<1x1x4x162xbf16>
    %19 = vector.shape_cast %18 : vector<1x1x4x162xbf16> to vector<4x162xbf16>
    %20 = arith.extf %19 : vector<4x162xbf16> to vector<4x162xf32>
    %c0_21 = arith.constant 0 : index
    %c0_22 = arith.constant 0 : index
    %c0_23 = arith.constant 0 : index
    %c37 = arith.constant 37 : index
    %21 = vector.load %arg2[%c0_21, %c0_22, %c0_23, %c37] : memref<1x1x4x216xbf16, #tpu.memory_space<vmem>>, vector<1x1x4x162xbf16>
    %22 = vector.shape_cast %21 : vector<1x1x4x162xbf16> to vector<4x162xbf16>
    %23 = arith.extf %22 : vector<4x162xbf16> to vector<4x162xf32>
    %c0_24 = arith.constant 0 : index
    %c0_25 = arith.constant 0 : index
    %c0_26 = arith.constant 0 : index
    %c38 = arith.constant 38 : index
    %24 = vector.load %arg2[%c0_24, %c0_25, %c0_26, %c38] : memref<1x1x4x216xbf16, #tpu.memory_space<vmem>>, vector<1x1x4x162xbf16>
    %25 = vector.shape_cast %24 : vector<1x1x4x162xbf16> to vector<4x162xbf16>
    %26 = arith.extf %25 : vector<4x162xbf16> to vector<4x162xf32>
    %27 = tpu.concatenate %2, %5, %8, %11, %14, %17, %20, %23, %26 in 0 : vector<4x162xf32>, vector<4x162xf32>, vector<4x162xf32>, vector<4x162xf32>, vector<4x162xf32>, vector<4x162xf32>, vector<4x162xf32>, vector<4x162xf32>, vector<4x162xf32> -> vector<36x162xf32>
    %c0_27 = arith.constant 0 : index
    %c0_28 = arith.constant 0 : index
    %28 = vector.load %arg3[%c0_27, %c0_28] : memref<16x36xf32, #tpu.memory_space<vmem>>, vector<16x36xf32>
    %cst = arith.constant dense<0.000000e+00> : vector<16x162xf32>
    %29 = tpu.matmul %28, %27, %cst {dimension_numbers = #tpu.dot_dimension_numbers<[1], [0], [0], [1], [0, 0, 1, 1], [], []>} : vector<16x36xf32>, vector<36x162xf32>, vector<16x162xf32> -> vector<16x162xf32>
    %c0_29 = arith.constant 0 : index
    %c0_30 = arith.constant 0 : index
    %30 = vector.load %arg4[%c0_29, %c0_30] : memref<16x1xf32, #tpu.memory_space<vmem>>, vector<16x1xf32>
    %31 = vector.broadcast %30 : vector<16x1xf32> to vector<16x162xf32>
    %32 = arith.addf %29, %31 : vector<16x162xf32>
    %c0_31 = arith.constant 0 : index
    %c0_32 = arith.constant 0 : index
    %c0_33 = arith.constant 0 : index
    %33 = vector.load %arg5[%c0_31, %c0_32, %c0_33] : memref<1x1x162xf32, #tpu.memory_space<vmem>>, vector<1x1x162xf32>
    %34 = vector.shape_cast %33 : vector<1x1x162xf32> to vector<1x162xf32>
    %35 = vector.broadcast %34 : vector<1x162xf32> to vector<16x162xf32>
    %36 = arith.mulf %32, %35 : vector<16x162xf32>
    %cst_34 = arith.constant dense<0.000000e+00> : vector<16xf32>
    %37 = vector.multi_reduction <add>, %36, %cst_34 [1] : vector<16x162xf32> to vector<16xf32>
    %38 = vector.shape_cast %37 : vector<16xf32> to vector<16x1xf32>
    %39 = arith.mulf %32, %36 : vector<16x162xf32>
    %cst_35 = arith.constant dense<0.000000e+00> : vector<16xf32>
    %40 = vector.multi_reduction <add>, %39, %cst_35 [1] : vector<16x162xf32> to vector<16xf32>
    %41 = vector.shape_cast %40 : vector<16xf32> to vector<16x1xf32>
    %42 = tpu.concatenate %38, %41 in 1 : vector<16x1xf32>, vector<16x1xf32> -> vector<16x2xf32>
    %c0_36 = arith.constant 0 : index
    %c0_37 = arith.constant 0 : index
    %c0_38 = arith.constant 0 : index
    %c0_39 = arith.constant 0 : index
    %43 = vector.load %arg6[%c0_36, %c0_37, %c0_38, %c0_39] : memref<1x1x16x2xf32, #tpu.memory_space<vmem>>, vector<1x1x16x2xf32>
    %44 = vector.shape_cast %43 : vector<1x1x16x2xf32> to vector<16x2xf32>
    %45 = vector.shape_cast %42 : vector<16x2xf32> to vector<1x1x16x2xf32>
    tpu.vector_store %arg6[%c0_36, %c0_37, %c0_38, %c0_39], %45 {strides = array<i32>} : memref<1x1x16x2xf32, #tpu.memory_space<vmem>>, vector<1x1x16x2xf32>,
    return
  }
  func.func @transform_0(%arg0: i32, %arg1: i32) -> (i32, i32, i32, i32) {
    %c0_i32 = arith.constant 0 : i32
    %c0_i32_0 = arith.constant 0 : i32
    %c0_i32_1 = arith.constant 0 : i32
    return %arg0, %arg1, %c0_i32, %c0_i32_0 : i32, i32, i32, i32
  }
  func.func @transform_1(%arg0: i32, %arg1: i32) -> (i32, i32) {
    %c0_i32 = arith.constant 0 : i32
    %c0_i32_0 = arith.constant 0 : i32
    %c0_i32_1 = arith.constant 0 : i32
    return %c0_i32, %c0_i32_0 : i32, i32
  }
  func.func @transform_2(%arg0: i32, %arg1: i32) -> (i32, i32) {
    %c0_i32 = arith.constant 0 : i32
    %c0_i32_0 = arith.constant 0 : i32
    %c0_i32_1 = arith.constant 0 : i32
    return %c0_i32, %c0_i32_0 : i32, i32
  }
  func.func @transform_3(%arg0: i32, %arg1: i32) -> (i32, i32, i32) {
    %c0_i32 = arith.constant 0 : i32
    %c0_i32_0 = arith.constant 0 : i32
    %c0_i32_1 = arith.constant 0 : i32
    return %arg1, %c0_i32, %c0_i32_0 : i32, i32, i32
  }
  func.func @transform_4(%arg0: i32, %arg1: i32) -> (i32, i32, i32, i32) {
    %c0_i32 = arith.constant 0 : i32
    %c0_i32_0 = arith.constant 0 : i32
    %c0_i32_1 = arith.constant 0 : i32
    return %arg0, %arg1, %c0_i32, %c0_i32_0 : i32, i32, i32, i32
  }
}

module attributes {stable_mosaic.version = 11 : i64} {
  func.func @kernel(%arg0: i32, %arg1: i32, %arg2: memref<1x1x4x216xbf16, #tpu.memory_space<vmem>>, %arg3: memref<16x36xf32, #tpu.memory_space<vmem>>, %arg4: memref<16x1xf32, #tpu.memory_space<vmem>>, %arg5: memref<16x1xf32, #tpu.memory_space<vmem>>, %arg6: memref<1xf32, #tpu.memory_space<smem>>, %arg7: memref<1x1x16x162xbf16, #tpu.memory_space<vmem>>) attributes {dimension_semantics = [#tpu.dimension_semantics<parallel>, #tpu.dimension_semantics<parallel>], iteration_bounds = array<i64: 2, 2>, scalar_prefetch = 0 : i64, scratch_operands = 0 : i64, tpu.core_type = #tpu.core_type<tc>, window_params = [{transform_indices = @transform_0, window_bounds = array<i64: 1, 1, 4, 216>}, {pipeline_mode = #tpu.pipeline_mode<synchronous>, transform_indices = @transform_1, window_bounds = array<i64: 16, 36>}, {pipeline_mode = #tpu.pipeline_mode<synchronous>, transform_indices = @transform_2, window_bounds = array<i64: 16, 1>}, {pipeline_mode = #tpu.pipeline_mode<synchronous>, transform_indices = @transform_3, window_bounds = array<i64: 16, 1>}, {transform_indices = @transform_4, window_bounds = array<i64: 1>}, {transform_indices = @transform_5, window_bounds = array<i64: 1, 1, 16, 162>}]} {
    %c0 = arith.constant 0 : index
    %c0_0 = arith.constant 0 : index
    %c0_1 = arith.constant 0 : index
    %c0_2 = arith.constant 0 : index
    %0 = vector.load %arg2[%c0, %c0_0, %c0_1, %c0_2] : memref<1x1x4x216xbf16, #tpu.memory_space<vmem>>, vector<1x1x4x162xbf16>
    %1 = vector.shape_cast %0 : vector<1x1x4x162xbf16> to vector<4x162xbf16>
    %2 = arith.extf %1 : vector<4x162xbf16> to vector<4x162xf32>
    %c0_3 = arith.constant 0 : index
    %c0_4 = arith.constant 0 : index
    %c0_5 = arith.constant 0 : index
    %c1 = arith.constant 1 : index
    %3 = vector.load %arg2[%c0_3, %c0_4, %c0_5, %c1] : memref<1x1x4x216xbf16, #tpu.memory_space<vmem>>, vector<1x1x4x162xbf16>
    %4 = vector.shape_cast %3 : vector<1x1x4x162xbf16> to vector<4x162xbf16>
    %5 = arith.extf %4 : vector<4x162xbf16> to vector<4x162xf32>
    %c0_6 = arith.constant 0 : index
    %c0_7 = arith.constant 0 : index
    %c0_8 = arith.constant 0 : index
    %c2 = arith.constant 2 : index
    %6 = vector.load %arg2[%c0_6, %c0_7, %c0_8, %c2] : memref<1x1x4x216xbf16, #tpu.memory_space<vmem>>, vector<1x1x4x162xbf16>
    %7 = vector.shape_cast %6 : vector<1x1x4x162xbf16> to vector<4x162xbf16>
    %8 = arith.extf %7 : vector<4x162xbf16> to vector<4x162xf32>
    %c0_9 = arith.constant 0 : index
    %c0_10 = arith.constant 0 : index
    %c0_11 = arith.constant 0 : index
    %c18 = arith.constant 18 : index
    %9 = vector.load %arg2[%c0_9, %c0_10, %c0_11, %c18] : memref<1x1x4x216xbf16, #tpu.memory_space<vmem>>, vector<1x1x4x162xbf16>
    %10 = vector.shape_cast %9 : vector<1x1x4x162xbf16> to vector<4x162xbf16>
    %11 = arith.extf %10 : vector<4x162xbf16> to vector<4x162xf32>
    %c0_12 = arith.constant 0 : index
    %c0_13 = arith.constant 0 : index
    %c0_14 = arith.constant 0 : index
    %c19 = arith.constant 19 : index
    %12 = vector.load %arg2[%c0_12, %c0_13, %c0_14, %c19] : memref<1x1x4x216xbf16, #tpu.memory_space<vmem>>, vector<1x1x4x162xbf16>
    %13 = vector.shape_cast %12 : vector<1x1x4x162xbf16> to vector<4x162xbf16>
    %14 = arith.extf %13 : vector<4x162xbf16> to vector<4x162xf32>
    %c0_15 = arith.constant 0 : index
    %c0_16 = arith.constant 0 : index
    %c0_17 = arith.constant 0 : index
    %c20 = arith.constant 20 : index
    %15 = vector.load %arg2[%c0_15, %c0_16, %c0_17, %c20] : memref<1x1x4x216xbf16, #tpu.memory_space<vmem>>, vector<1x1x4x162xbf16>
    %16 = vector.shape_cast %15 : vector<1x1x4x162xbf16> to vector<4x162xbf16>
    %17 = arith.extf %16 : vector<4x162xbf16> to vector<4x162xf32>
    %c0_18 = arith.constant 0 : index
    %c0_19 = arith.constant 0 : index
    %c0_20 = arith.constant 0 : index
    %c36 = arith.constant 36 : index
    %18 = vector.load %arg2[%c0_18, %c0_19, %c0_20, %c36] : memref<1x1x4x216xbf16, #tpu.memory_space<vmem>>, vector<1x1x4x162xbf16>
    %19 = vector.shape_cast %18 : vector<1x1x4x162xbf16> to vector<4x162xbf16>
    %20 = arith.extf %19 : vector<4x162xbf16> to vector<4x162xf32>
    %c0_21 = arith.constant 0 : index
    %c0_22 = arith.constant 0 : index
    %c0_23 = arith.constant 0 : index
    %c37 = arith.constant 37 : index
    %21 = vector.load %arg2[%c0_21, %c0_22, %c0_23, %c37] : memref<1x1x4x216xbf16, #tpu.memory_space<vmem>>, vector<1x1x4x162xbf16>
    %22 = vector.shape_cast %21 : vector<1x1x4x162xbf16> to vector<4x162xbf16>
    %23 = arith.extf %22 : vector<4x162xbf16> to vector<4x162xf32>
    %c0_24 = arith.constant 0 : index
    %c0_25 = arith.constant 0 : index
    %c0_26 = arith.constant 0 : index
    %c38 = arith.constant 38 : index
    %24 = vector.load %arg2[%c0_24, %c0_25, %c0_26, %c38] : memref<1x1x4x216xbf16, #tpu.memory_space<vmem>>, vector<1x1x4x162xbf16>
    %25 = vector.shape_cast %24 : vector<1x1x4x162xbf16> to vector<4x162xbf16>
    %26 = arith.extf %25 : vector<4x162xbf16> to vector<4x162xf32>
    %27 = tpu.concatenate %2, %5, %8, %11, %14, %17, %20, %23, %26 in 0 : vector<4x162xf32>, vector<4x162xf32>, vector<4x162xf32>, vector<4x162xf32>, vector<4x162xf32>, vector<4x162xf32>, vector<4x162xf32>, vector<4x162xf32>, vector<4x162xf32> -> vector<36x162xf32>
    %c0_27 = arith.constant 0 : index
    %c0_28 = arith.constant 0 : index
    %28 = vector.load %arg3[%c0_27, %c0_28] : memref<16x36xf32, #tpu.memory_space<vmem>>, vector<16x36xf32>
    %cst = arith.constant dense<0.000000e+00> : vector<16x162xf32>
    %29 = tpu.matmul %28, %27, %cst {dimension_numbers = #tpu.dot_dimension_numbers<[1], [0], [0], [1], [0, 0, 1, 1], [], []>} : vector<16x36xf32>, vector<36x162xf32>, vector<16x162xf32> -> vector<16x162xf32>
    %c0_29 = arith.constant 0 : index
    %c0_30 = arith.constant 0 : index
    %30 = vector.load %arg4[%c0_29, %c0_30] : memref<16x1xf32, #tpu.memory_space<vmem>>, vector<16x1xf32>
    %31 = vector.broadcast %30 : vector<16x1xf32> to vector<16x162xf32>
    %32 = arith.mulf %29, %31 : vector<16x162xf32>
    %c0_31 = arith.constant 0 : index
    %c0_32 = arith.constant 0 : index
    %33 = vector.load %arg5[%c0_31, %c0_32] : memref<16x1xf32, #tpu.memory_space<vmem>>, vector<16x1xf32>
    %34 = vector.broadcast %33 : vector<16x1xf32> to vector<16x162xf32>
    %35 = arith.addf %32, %34 : vector<16x162xf32>
    %c0_33 = arith.constant 0 : index
    %36 = memref.load %arg6[%c0_33] : memref<1xf32, #tpu.memory_space<smem>>
    %cst_34 = arith.constant 0.000000e+00 : f32
    %37 = vector.broadcast %cst_34 : f32 to vector<16x162xf32>
    %38 = arith.cmpf ogt, %35, %37 : vector<16x162xf32>
    %39 = vector.broadcast %36 : f32 to vector<16x162xf32>
    %40 = arith.mulf %39, %35 : vector<16x162xf32>
    %41 = arith.select %38, %35, %40 : vector<16x162xi1>, vector<16x162xf32>
    %42 = arith.truncf %41 : vector<16x162xf32> to vector<16x162xbf16>
    %c0_35 = arith.constant 0 : index
    %c0_36 = arith.constant 0 : index
    %c0_37 = arith.constant 0 : index
    %c0_38 = arith.constant 0 : index
    %43 = vector.load %arg7[%c0_35, %c0_36, %c0_37, %c0_38] : memref<1x1x16x162xbf16, #tpu.memory_space<vmem>>, vector<1x1x16x162xbf16>
    %44 = vector.shape_cast %43 : vector<1x1x16x162xbf16> to vector<16x162xbf16>
    %45 = vector.shape_cast %42 : vector<16x162xbf16> to vector<1x1x16x162xbf16>
    tpu.vector_store %arg7[%c0_35, %c0_36, %c0_37, %c0_38], %45 {strides = array<i32>} : memref<1x1x16x162xbf16, #tpu.memory_space<vmem>>, vector<1x1x16x162xbf16>,
    return
  }
  func.func @transform_0(%arg0: i32, %arg1: i32) -> (i32, i32, i32, i32) {
    %c0_i32 = arith.constant 0 : i32
    %c0_i32_0 = arith.constant 0 : i32
    %c0_i32_1 = arith.constant 0 : i32
    return %arg0, %arg1, %c0_i32, %c0_i32_0 : i32, i32, i32, i32
  }
  func.func @transform_1(%arg0: i32, %arg1: i32) -> (i32, i32) {
    %c0_i32 = arith.constant 0 : i32
    %c0_i32_0 = arith.constant 0 : i32
    %c0_i32_1 = arith.constant 0 : i32
    return %c0_i32, %c0_i32_0 : i32, i32
  }
  func.func @transform_2(%arg0: i32, %arg1: i32) -> (i32, i32) {
    %c0_i32 = arith.constant 0 : i32
    %c0_i32_0 = arith.constant 0 : i32
    %c0_i32_1 = arith.constant 0 : i32
    return %c0_i32, %c0_i32_0 : i32, i32
  }
  func.func @transform_3(%arg0: i32, %arg1: i32) -> (i32, i32) {
    %c0_i32 = arith.constant 0 : i32
    %c0_i32_0 = arith.constant 0 : i32
    %c0_i32_1 = arith.constant 0 : i32
    return %c0_i32, %c0_i32_0 : i32, i32
  }
  func.func @transform_4(%arg0: i32, %arg1: i32) -> i32 {
    %c0_i32 = arith.constant 0 : i32
    %c0_i32_0 = arith.constant 0 : i32
    return %c0_i32 : i32
  }
  func.func @transform_5(%arg0: i32, %arg1: i32) -> (i32, i32, i32, i32) {
    %c0_i32 = arith.constant 0 : i32
    %c0_i32_0 = arith.constant 0 : i32
    %c0_i32_1 = arith.constant 0 : i32
    return %arg0, %arg1, %c0_i32, %c0_i32_0 : i32, i32, i32, i32
  }
}

</mosaic_0001>

<llo_original>
// kernel: squeeze.2
$region0: #{squeeze.2}
  %s0 = inlined_call_operand.vmem [shape: f32[16], index: 0, kind: input, shape index: {}]
  %s1 = inlined_call_operand.vmem [shape: f32[4,4], index: 1, kind: output, shape index: {}]
  $region1: #{squeeze.2} parent=0
    #allocation0 [shape = 'u8[4096]{0}', space=vmem, size = 0x1000, scoped, tag = 'scoped mem for output reshape']
    #allocation1 [shape = 'u8[4096]{0}', space=vmem, size = 0x1000, scoped, tag = 'scoped mem for input reshape']
    %s3 = ssub.s32 2, 1
    %v4 = vld [vmem:[%s0] sm:%s3]
    %5 = vst [vmem:[#allocation1] sm:%s3] %v4
    %v6 = vld [vmem:[#allocation1] sm:$0x1]
    %vm7 = vcmask 31744
    %8 = vst.msk [vmem:[#allocation0] sm:$0x1] %vm7, %v6
    %v9 = vld [vmem:[#allocation1] sm:$0x1]
    %10 = vrot.lane.b32.xlu0 %v9, 124
    %v11 = vpop.permute.xlu0 %10
    %vm12 = vcmask 31744
    %s13 = scalar_lea.vmem [#allocation0], 1
    %14 = vst.msk [vmem:[%s13] sm:$0x1] %vm12, %v11
    %v15 = vld [vmem:[#allocation1] sm:$0x1]
    %16 = vrot.lane.b32.xlu0 %v15, 120
    %v17 = vpop.permute.xlu0 %16
    %vm18 = vcmask 31744
    %s19 = scalar_lea.vmem [#allocation0], 2
    %20 = vst.msk [vmem:[%s19] sm:$0x1] %vm18, %v17
    %v21 = vld [vmem:[#allocation1] sm:$0x1]
    %22 = vrot.lane.b32.xlu0 %v21, 116
    %v23 = vpop.permute.xlu0 %22
    %vm24 = vcmask 31744
    %s25 = scalar_lea.vmem [#allocation0], 3
    %26 = vst.msk [vmem:[%s25] sm:$0x1] %vm24, %v23
    %s28 = ssub.s32 16, 1
    %v29 = vld [vmem:[#allocation0] sm:%s28]
    %s31 = ssub.s32 16, 1
    %32 = vst [vmem:[%s1] sm:%s31] %v29

// kernel: ps_block_forward.2
$region0: #{ps_block_forward.2}
  #allocation0 [shape = 'u32[]', space=smem, size = 0x4, offset = 0x4, fixed_abs, tag = 'smem constant byte address 0x4 - core index']
  #allocation1 [shape = 'u32[72,128]{1,0:T(1,128)}', space=vmem, size = 0x9000, scoped, tag = 'internal scratch']
  %s0 = inlined_call_operand.vmem [shape: bf16[2,2,4,216], index: 0, kind: input, shape index: {}]
  %s1 = inlined_call_operand.vmem [shape: f32[16,36], index: 1, kind: input, shape index: {}]
  %s2 = inlined_call_operand.vmem [shape: f32[16,1], index: 2, kind: input, shape index: {}]
  %s3 = inlined_call_operand.vmem [shape: f32[2,1,162], index: 3, kind: input, shape index: {}]
  %s4 = inlined_call_operand.vmem [shape: f32[2,2,16,2], index: 4, kind: output, shape index: {}]
  %s5 = sld [smem:[#allocation0]]
  $region49: #{ps_block_forward.2} parent=0
    _
  %s7 = ssub.s32 1, %s5
  %s8 = scalar_select 0, %s7, %s5
  loop: start=0, step=1, limit=6
  $region2: #{ps_block_forward.2} parent=0 // loop_pre_header
    _
  $region3: #{ps_block_forward.2} parent=0 // loop_header
    %s10 = sphi 0, %s14
    %p11 = scmp.ge.s32.totalorder %s10, 6
    %s17 = sphi 0, %s29
    %s18 = sphi 0, %s25
    %s19 = sphi 0, %s17
    %s20 = sphi 0, %s18
    %s21 = sphi 0, %s19
    %s22 = sphi 0, %s20
    %s34 = sphi 0, %s36
    %s37 = sphi 0, %s34
    %s38 = sphi 0, %s37
    %s54 = sphi 0, %s38
    %s58 = sphi 0, %s58
    %s60 = sphi 0, %s58
    %s61 = sphi 0, %s60
    %s75 = sphi 0, %s61
    %s79 = sphi 0, %s79
    %s81 = sphi 0, %s79
    %s82 = sphi 0, %s81
    %s96 = sphi 0, %s82
    %s102 = sphi 0, %s104
    %s105 = sphi 0, %s102
    %s106 = sphi 0, %s105
    %s122 = sphi 0, %s106
    %s130 = sphi 0, %s132
    %s133 = sphi 0, %s130
    %s134 = sphi 0, %s133
    %s150 = sphi 0, %s134
  $region4: #{ps_block_forward.2} parent=0 // loop_header_branch
    %13 = sbr.rel (%p11) target = $region8
  $region5: #{ps_block_forward.2} parent=0 // loop_body
    %s15 = ssub.s32 %s10, 1
    %s16 = ssub.s32 %s10, 2
    %s23 = sadd.s32 1, %s18
    %p24 = scmp.ge.s32.totalorder %s23, 2
    %s25 = scalar_select %p24, 0, %s23
    %s26 = sadd.s32 1, %s17
    %s27 = scalar_select %p24, %s26, %s17
    %p28 = scmp.ge.s32.totalorder %s27, 2
    %s29 = scalar_select %p28, 0, %s27
    %s30 = ssub.s32 %s17, %s29
    %s31 = ssub.s32 %s18, %s25
    %s32 = sor.u32 %s30, %s31
    %p33 = scmp.eq.s32.totalorder %s32, 0
    %s35 = sadd.s32 %s34, 1
    %s36 = scalar_select %p33, %s34, %s35
    %p39 = pneg %p33
    %p40 = scmp.eq.s32.totalorder %s10, 3
    %p41 = por %p39, %p40
    %p42 = scmp.ne.s32.totalorder %s34, %s37
    %p43 = scmp.eq.s32.totalorder %s10, 0
    %p44 = por %p42, %p43
    %p45 = scmp.ne.s32.totalorder %s34, %s37
    %p46 = scmp.eq.s32.totalorder %s15, 3
    %p47 = por %p45, %p46
    %p48 = scmp.ne.s32.totalorder %s37, %s38
    %p49 = scmp.eq.s32.totalorder %s15, 0
    %p50 = por %p48, %p49
    %p51 = scmp.ne.s32.totalorder %s37, %s38
    %p52 = scmp.eq.s32.totalorder %s16, 3
    %p53 = por %p51, %p52
    %p55 = scmp.ne.s32.totalorder %s38, %s54
    %p56 = scmp.eq.s32.totalorder %s16, 0
    %p57 = por %p55, %p56
    %s59 = sadd.s32 %s58, 1
    %p62 = scmp.eq.s32.totalorder %s10, 3
    %p63 = scmp.ne.s32.totalorder %s58, %s60
    %p64 = scmp.eq.s32.totalorder %s10, 0
    %p65 = por %p63, %p64
    %p66 = scmp.ne.s32.totalorder %s58, %s60
    %p67 = scmp.eq.s32.totalorder %s15, 3
    %p68 = por %p66, %p67
    %p69 = scmp.ne.s32.totalorder %s60, %s61
    %p70 = scmp.eq.s32.totalorder %s15, 0
    %p71 = por %p69, %p70
    %p72 = scmp.ne.s32.totalorder %s60, %s61
    %p73 = scmp.eq.s32.totalorder %s16, 3
    %p74 = por %p72, %p73
    %p76 = scmp.ne.s32.totalorder %s61, %s75
    %p77 = scmp.eq.s32.totalorder %s16, 0
    %p78 = por %p76, %p77
    %s80 = sadd.s32 %s79, 1
    %p83 = scmp.eq.s32.totalorder %s10, 3
    %p84 = scmp.ne.s32.totalorder %s79, %s81
    %p85 = scmp.eq.s32.totalorder %s10, 0
    %p86 = por %p84, %p85
    %p87 = scmp.ne.s32.totalorder %s79, %s81
    %p88 = scmp.eq.s32.totalorder %s15, 3
    %p89 = por %p87, %p88
    %p90 = scmp.ne.s32.totalorder %s81, %s82
    %p91 = scmp.eq.s32.totalorder %s15, 0
    %p92 = por %p90, %p91
    %p93 = scmp.ne.s32.totalorder %s81, %s82
    %p94 = scmp.eq.s32.totalorder %s16, 3
    %p95 = por %p93, %p94
    %p97 = scmp.ne.s32.totalorder %s82, %s96
    %p98 = scmp.eq.s32.totalorder %s16, 0
    %p99 = por %p97, %p98
    %s100 = ssub.s32 %s18, %s25
    %p101 = scmp.eq.s32.totalorder %s100, 0
    %s103 = sadd.s32 %s102, 1
    %s104 = scalar_select %p101, %s102, %s103
    %p107 = pneg %p101
    %p108 = scmp.eq.s32.totalorder %s10, 3
    %p109 = por %p107, %p108
    %p110 = scmp.ne.s32.totalorder %s102, %s105
    %p111 = scmp.eq.s32.totalorder %s10, 0
    %p112 = por %p110, %p111
    %p113 = scmp.ne.s32.totalorder %s102, %s105
    %p114 = scmp.eq.s32.totalorder %s15, 3
    %p115 = por %p113, %p114
    %p116 = scmp.ne.s32.totalorder %s105, %s106
    %p117 = scmp.eq.s32.totalorder %s15, 0
    %p118 = por %p116, %p117
    %p119 = scmp.ne.s32.totalorder %s105, %s106
    %p120 = scmp.eq.s32.totalorder %s16, 3
    %p121 = por %p119, %p120
    %p123 = scmp.ne.s32.totalorder %s106, %s122
    %p124 = scmp.eq.s32.totalorder %s16, 0
    %p125 = por %p123, %p124
    %s126 = ssub.s32 %s17, %s29
    %s127 = ssub.s32 %s18, %s25
    %s128 = sor.u32 %s126, %s127
    %p129 = scmp.eq.s32.totalorder %s128, 0
    %s131 = sadd.s32 %s130, 1
    %s132 = scalar_select %p129, %s130, %s131
    %p135 = pneg %p129
    %p136 = scmp.eq.s32.totalorder %s10, 3
    %p137 = por %p135, %p136
    %p138 = scmp.ne.s32.totalorder %s130, %s133
    %p139 = scmp.eq.s32.totalorder %s10, 0
    %p140 = por %p138, %p139
    %p141 = scmp.ne.s32.totalorder %s130, %s133
    %p142 = scmp.eq.s32.totalorder %s15, 3
    %p143 = por %p141, %p142
    %p144 = scmp.ne.s32.totalorder %s133, %s134
    %p145 = scmp.eq.s32.totalorder %s15, 0
    %p146 = por %p144, %p145
    %p147 = scmp.ne.s32.totalorder %s133, %s134
    %p148 = scmp.eq.s32.totalorder %s16, 3
    %p149 = por %p147, %p148
    %p151 = scmp.ne.s32.totalorder %s134, %s150
    %p152 = scmp.eq.s32.totalorder %s16, 0
    %p153 = por %p151, %p152
    %p154 = scmp.le.s32.totalorder 1, %s10
    %p155 = scmp.lt.s32.totalorder %s10, 5
    %p156 = pnand %p154, %p155
    %p157 = pneg %p156
    // Predicated region
    $region9: #{ps_block_forward.2} parent=5 // pred_check
      _
    $region10: #{ps_block_forward.2} parent=5 // pred_check_branch
      %159 = sbr.rel (%p156) target = $region12
    $region11: #{ps_block_forward.2} parent=5 // pred_region
      %s160 = ssub.s32 %s10, 1
      // Predicated region
      $region13: #{ps_block_forward.2} parent=11 // pred_check
        %p161 = pneg %p71
      $region14: #{ps_block_forward.2} parent=11 // pred_check_branch
        %163 = sbr.rel (%p161) target = $region16
      $region15: #{ps_block_forward.2} parent=11 // pred_region
        _
      $region16: #{ps_block_forward.2} parent=11 // pred_fallthru
        _
      // Predicated region
      $region17: #{ps_block_forward.2} parent=11 // pred_check
        %p164 = pneg %p92
      $region18: #{ps_block_forward.2} parent=11 // pred_check_branch
        %166 = sbr.rel (%p164) target = $region20
      $region19: #{ps_block_forward.2} parent=11 // pred_region
        _
      $region20: #{ps_block_forward.2} parent=11 // pred_fallthru
        _
    $region12: #{ps_block_forward.2} parent=5 // pred_fallthru
      _
    %p167 = scmp.lt.s32.totalorder %s10, 4
    // Predicated region
    $region21: #{ps_block_forward.2} parent=5 // pred_check
      %p168 = pneg %p167
    $region22: #{ps_block_forward.2} parent=5 // pred_check_branch
      %170 = sbr.rel (%p168) target = $region24
    $region23: #{ps_block_forward.2} parent=5 // pred_region
      // Predicated region
      $region25: #{ps_block_forward.2} parent=23 // pred_check
        %p171 = pneg %p44
      $region26: #{ps_block_forward.2} parent=23 // pred_check_branch
        %173 = sbr.rel (%p171) target = $region28
      $region27: #{ps_block_forward.2} parent=23 // pred_region
        %p174 = scmp.lt.s32.totalorder %s17, 1
        %s175 = scalar_select %p174, %s17, 1
        %p176 = scmp.lt.s32.totalorder %s18, 1
        %s177 = scalar_select %p176, %s18, 1
        %s178 = smul.addr %s177, 2
        %s179 = smul.addr %s175, 4
        %s180 = sadd.s32 %s178, %s179
        %s181 = smul.addr %s180, 2
        %s182 = scalar_lea.vmem %s0, %s181
      $region28: #{ps_block_forward.2} parent=23 // pred_fallthru
        _
      // Predicated region
      $region29: #{ps_block_forward.2} parent=23 // pred_check
        %p183 = pneg %p112
      $region30: #{ps_block_forward.2} parent=23 // pred_check_branch
        %185 = sbr.rel (%p183) target = $region32
      $region31: #{ps_block_forward.2} parent=23 // pred_region
        %p186 = scmp.lt.s32.totalorder %s18, 1
        %s187 = scalar_select %p186, %s18, 1
        %s188 = smul.addr %s187, 2
        %s189 = scalar_lea.vmem %s3, %s188
      $region32: #{ps_block_forward.2} parent=23 // pred_fallthru
        _
    $region24: #{ps_block_forward.2} parent=5 // pred_fallthru
      _
    %p190 = scmp.le.s32.totalorder 1, %s10
    %p191 = scmp.lt.s32.totalorder %s10, 5
    %p192 = pnand %p190, %p191
    %p193 = pneg %p192
    // Predicated region
    $region33: #{ps_block_forward.2} parent=5 // pred_check
      _
    $region34: #{ps_block_forward.2} parent=5 // pred_check_branch
      %195 = sbr.rel (%p192) target = $region36
    $region35: #{ps_block_forward.2} parent=5 // pred_region
      %s196 = ssub.s32 %s10, 1
      %p197 = scmp.lt.s32.totalorder %s19, 1
      %s198 = scalar_select %p197, %s19, 1
      %p199 = scmp.lt.s32.totalorder %s20, 1
      %s200 = scalar_select %p199, %s20, 1
      %s201 = smul.addr %s200, 2
      %s202 = smul.addr %s198, 4
      %s203 = sadd.s32 %s201, %s202
      %s204 = smul.addr %s203, 2
      %s205 = scalar_lea.vmem %s0, %s204
      %p206 = pneg %p50
      %p207 = pneg %p47
      %p208 = pneg %p71
      %p209 = pneg %p68
      %p210 = pneg %p92
      %p211 = pneg %p89
      %p212 = scmp.lt.s32.totalorder %s20, 1
      %s213 = scalar_select %p212, %s20, 1
      %s214 = smul.addr %s213, 2
      %s215 = scalar_lea.vmem %s3, %s214
      %p216 = pneg %p118
      %p217 = pneg %p115
      %p218 = pneg %p146
      %p219 = pneg %p143
      %p220 = scmp.lt.s32.totalorder %s19, 1
      %s221 = scalar_select %p220, %s19, 1
      %p222 = scmp.lt.s32.totalorder %s20, 1
      %s223 = scalar_select %p222, %s20, 1
      %s224 = smul.addr %s223, 2
      %s225 = smul.addr %s221, 4
      %s226 = sadd.s32 %s224, %s225
      %s227 = smul.addr %s226, 8
      %s228 = scalar_lea.vmem %s4, %s227
      %p229 = scmp.lt.s32.totalorder %s19, 1
      %s230 = scalar_select %p229, %s19, 1
      %p231 = scmp.lt.s32.totalorder %s20, 1
      %s232 = scalar_select %p231, %s20, 1
      %s233 = smul.addr %s232, 2
      %s234 = smul.addr %s230, 4
      %s235 = sadd.s32 %s233, %s234
      %s236 = smul.addr %s235, 2
      %s237 = scalar_lea.vmem %s0, %s236
      %p238 = scmp.lt.s32.totalorder %s20, 1
      %s239 = scalar_select %p238, %s20, 1
      %s240 = smul.addr %s239, 2
      %s241 = scalar_lea.vmem %s3, %s240
      %p242 = scmp.lt.s32.totalorder %s19, 1
      %s243 = scalar_select %p242, %s19, 1
      %p244 = scmp.lt.s32.totalorder %s20, 1
      %s245 = scalar_select %p244, %s20, 1
      %s246 = smul.addr %s245, 2
      %s247 = smul.addr %s243, 4
      %s248 = sadd.s32 %s246, %s247
      %s249 = smul.addr %s248, 8
      %s250 = scalar_lea.vmem %s4, %s249
      %v251 = vld [vmem:[%s237] sm:$0xf]
      %v252 = vunpack.c.l.bf16 %v251
      %254 = vst [vmem:[#allocation1] ss:$2 sm:$0xff] %v252
      %v255 = vld.sshfl [vmem:[#allocation1] sm:$0xff pattern:$0x75316420]
      %v256 = vld.sshfl [vmem:[#allocation1 + $0x8] sm:$0xff pattern:$0x75316420]
      %s259 = scalar_lea.vmem [#allocation1], 1
      %260 = vst [vmem:[%s259] ss:$2 sm:$0xff] %v252
      %v261 = vld.sshfl [vmem:[#allocation1] sm:$0xff pattern:$0x75316420]
      %v262 = vld.sshfl [vmem:[#allocation1 + $0x8] sm:$0xff pattern:$0x75316420]
      %263 = vrot.lane.b32.xlu0 %v261, 127
      %v264 = vpop.permute.xlu0 %263
      %265 = vrot.lane.b32.xlu0 %v262, 127
      %v266 = vpop.permute.xlu0 %265
      %vm267 = vcmask 1039360
      %v268 = vsel %vm267, %v264, %v266
      %271 = vst [vmem:[#allocation1] ss:$2 sm:$0xff] %v252
      %v272 = vld.sshfl [vmem:[#allocation1] sm:$0xff pattern:$0x75316420]
      %v273 = vld.sshfl [vmem:[#allocation1 + $0x8] sm:$0xff pattern:$0x75316420]
      %274 = vrot.lane.b32.xlu0 %v272, 126
      %v275 = vpop.permute.xlu0 %274
      %276 = vrot.lane.b32.xlu0 %v273, 126
      %v277 = vpop.permute.xlu0 %276
      %vm278 = vcmask 1031168
      %v279 = vsel %vm278, %v275, %v277
      %s282 = scalar_lea.vmem [#allocation1], 1
      %283 = vst [vmem:[%s282] ss:$2 sm:$0xff] %v252
      %v284 = vld.sshfl [vmem:[#allocation1] sm:$0xff pattern:$0x75316420]
      %v285 = vld.sshfl [vmem:[#allocation1 + $0x8] sm:$0xff pattern:$0x75316420]
      %286 = vrot.lane.b32.xlu0 %v284, 110
      %v287 = vpop.permute.xlu0 %286
      %288 = vrot.lane.b32.xlu0 %v285, 110
      %v289 = vpop.permute.xlu0 %288
      %vm290 = vcmask 900096
      %v291 = vsel %vm290, %v287, %v289
      %294 = vst [vmem:[#allocation1] ss:$2 sm:$0xff] %v252
      %v295 = vld.sshfl [vmem:[#allocation1] sm:$0xff pattern:$0x75316420]
      %v296 = vld.sshfl [vmem:[#allocation1 + $0x8] sm:$0xff pattern:$0x75316420]
      %297 = vrot.lane.b32.xlu0 %v295, 109
      %v298 = vpop.permute.xlu0 %297
      %299 = vrot.lane.b32.xlu0 %v296, 109
      %v300 = vpop.permute.xlu0 %299
      %vm301 = vcmask 891904
      %v302 = vsel %vm301, %v298, %v300
      %s305 = scalar_lea.vmem [#allocation1], 1
      %306 = vst [vmem:[%s305] ss:$2 sm:$0xff] %v252
      %v307 = vld.sshfl [vmem:[#allocation1] sm:$0xff pattern:$0x75316420]
      %v308 = vld.sshfl [vmem:[#allocation1 + $0x8] sm:$0xff pattern:$0x75316420]
      %309 = vrot.lane.b32.xlu0 %v307, 108
      %v310 = vpop.permute.xlu0 %309
      %311 = vrot.lane.b32.xlu0 %v308, 108
      %v312 = vpop.permute.xlu0 %311
      %vm313 = vcmask 883712
      %v314 = vsel %vm313, %v310, %v312
      %317 = vst [vmem:[#allocation1] ss:$2 sm:$0xff] %v252
      %v318 = vld.sshfl [vmem:[#allocation1] sm:$0xff pattern:$0x75316420]
      %v319 = vld.sshfl [vmem:[#allocation1 + $0x8] sm:$0xff pattern:$0x75316420]
      %320 = vrot.lane.b32.xlu0 %v318, 92
      %v321 = vpop.permute.xlu0 %320
      %322 = vrot.lane.b32.xlu0 %v319, 92
      %v323 = vpop.permute.xlu0 %322
      %vm324 = vcmask 752640
      %v325 = vsel %vm324, %v321, %v323
      %s328 = scalar_lea.vmem [#allocation1], 1
      %329 = vst [vmem:[%s328] ss:$2 sm:$0xff] %v252
      %v330 = vld.sshfl [vmem:[#allocation1] sm:$0xff pattern:$0x75316420]
      %v331 = vld.sshfl [vmem:[#allocation1 + $0x8] sm:$0xff pattern:$0x75316420]
      %332 = vrot.lane.b32.xlu0 %v330, 91
      %v333 = vpop.permute.xlu0 %332
      %334 = vrot.lane.b32.xlu0 %v331, 91
      %v335 = vpop.permute.xlu0 %334
      %vm336 = vcmask 744448
      %v337 = vsel %vm336, %v333, %v335
      %340 = vst [vmem:[#allocation1] ss:$2 sm:$0xff] %v252
      %v341 = vld.sshfl [vmem:[#allocation1] sm:$0xff pattern:$0x75316420]
      %v342 = vld.sshfl [vmem:[#allocation1 + $0x8] sm:$0xff pattern:$0x75316420]
      %343 = vrot.lane.b32.xlu0 %v341, 90
      %v344 = vpop.permute.xlu0 %343
      %345 = vrot.lane.b32.xlu0 %v342, 90
      %v346 = vpop.permute.xlu0 %345
      %vm347 = vcmask 736256
      %v348 = vsel %vm347, %v344, %v346
      %vm349 = vcmask 1043456
      %v350 = vsel %vm349, %v255, %v268
      %v351 = vsel %vm349, %v256, %v266
      %v352 = vsel %vm349, %v279, %v291
      %v353 = vsel %vm349, %v277, %v289
      %v354 = vsel %vm349, %v302, %v314
      %v355 = vsel %vm349, %v300, %v312
      %v356 = vsel %vm349, %v325, %v337
      %v357 = vsel %vm349, %v323, %v335
      %v358 = vld [vmem:[%s1] sm:$0xff]
      %v359 = vld [vmem:[%s1 + $0x8] sm:$0xff]
      %v360 = vld [vmem:[%s2] sm:$0xff]
      %v361 = vld [vmem:[%s2 + $0x8] sm:$0xff]
      %363 = vset.pattern.permute.xlu0 0
      %364 = vperm.xlu0 %363, %v360
      %v365 = vpop.permute.xlu0 %364
      %368 = vset.pattern.permute.xlu0 0
      %369 = vperm.xlu0 %368, %v361
      %v370 = vpop.permute.xlu0 %369
      %vm372 = vcmask 293888
      %v374 = vsel %vm372, %v358, 0
      %v377 = vsel %vm372, %v359, 0
      %v379 = vsel %vm349, %v348, 0
      %v381 = vsel %vm349, %v346, 0
      %383 = vmatpush.msra.mxu0 0.0
      %384 = vmatpush.msra.mxu0 0.0
      %385 = vmatpush.msra.mxu0 0.0
      %386 = vmatpush.msra.mxu0 0.0
      %387 = vmatpush.msra.mxu0 0.0
      %388 = vmatpush.msra.mxu0 0.0
      %389 = vmatpush.msra.mxu0 0.0
      %390 = vmatpush.msra.mxu0 0.0
      %391 = vmatpush.msra.mxu0 0.0
      %392 = vmatpush.msra.mxu0 0.0
      %393 = vmatpush.msra.mxu0 0.0
      %394 = vmatpush.msra.mxu0 %v379
      %395 = vmatpush.msra.mxu0 %v356
      %396 = vmatpush.msra.mxu0 %v354
      %397 = vmatpush.msra.mxu0 %v352
      %398 = vmatpush.msra.mxu0 %v350
      %399 = vmatmul.f32.gmra.mxu0 %v374
      %v400 = vpop.f32.mrf.mxu0
      %v401 = vadd.f32 %v365, %v400
      %402 = vmatmul.f32.gmra.mxu0 %v377
      %v403 = vpop.f32.mrf.mxu0
      %v404 = vadd.f32 %v370, %v403
      %405 = vdwg.mxu0
      %406 = vmatpush.msra.mxu0 0.0
      %407 = vmatpush.msra.mxu0 0.0
      %408 = vmatpush.msra.mxu0 0.0
      %409 = vmatpush.msra.mxu0 0.0
      %410 = vmatpush.msra.mxu0 0.0
      %411 = vmatpush.msra.mxu0 0.0
      %412 = vmatpush.msra.mxu0 0.0
      %413 = vmatpush.msra.mxu0 0.0
      %414 = vmatpush.msra.mxu0 0.0
      %415 = vmatpush.msra.mxu0 0.0
      %416 = vmatpush.msra.mxu0 0.0
      %417 = vmatpush.msra.mxu0 %v381
      %418 = vmatpush.msra.mxu0 %v357
      %419 = vmatpush.msra.mxu0 %v355
      %420 = vmatpush.msra.mxu0 %v353
      %421 = vmatpush.msra.mxu0 %v351
      %422 = vmatmul.f32.gmra.mxu0 %v374
      %v423 = vpop.f32.mrf.mxu0
      %v424 = vadd.f32 %v365, %v423
      %425 = vmatmul.f32.gmra.mxu0 %v377
      %v426 = vpop.f32.mrf.mxu0
      %v427 = vadd.f32 %v370, %v426
      %428 = vdwg.mxu0
      %v429 = vld [vmem:[%s241] sm:$0x3]
      %v431 = vperm.slane %v429, 0
      %v432 = vperm.slane %v429, 1
      %v435 = vmul.f32 %v401, %v431
      %v436 = vmul.f32 %v424, %v432
      %v437 = vmul.f32 %v404, %v431
      %v438 = vmul.f32 %v427, %v432
      %vm439 = vcmask 277504
      %v440 = vsel %vm439, %v436, 0.0
      %v441 = vadd.f32 %v435, %v440
      %442 = vadd.xlane.f32.xlu0 %v441
      %v443 = vpop.xlane.xlu0 %442
      %v444 = vsel %vm439, %v438, 0.0
      %v445 = vadd.f32 %v437, %v444
      %446 = vadd.xlane.f32.xlu0 %v445
      %v447 = vpop.xlane.xlu0 %446
      %v448 = vmul.f32 %v401, %v435
      %v449 = vmul.f32 %v424, %v436
      %v450 = vmul.f32 %v404, %v437
      %v451 = vmul.f32 %v427, %v438
      %v452 = vsel %vm439, %v449, 0.0
      %v453 = vadd.f32 %v448, %v452
      %454 = vadd.xlane.f32.xlu0 %v453
      %v455 = vpop.xlane.xlu0 %454
      %v456 = vsel %vm439, %v451, 0.0
      %v457 = vadd.f32 %v450, %v456
      %458 = vadd.xlane.f32.xlu0 %v457
      %v459 = vpop.xlane.xlu0 %458
      %vm460 = vcmask 7168
      %v461 = vsel %vm460, %v443, %v455
      %v462 = vsel %vm460, %v447, %v459
      %vm463 = vcmask 15360
      %464 = vst.msk [vmem:[%s250] sm:$0xff] %vm463, %v461
      %465 = vst.msk [vmem:[%s250 + $0x8] sm:$0xff] %vm463, %v462
      %p466 = scmp.lt.s32.totalorder %s19, 1
      %s467 = scalar_select %p466, %s19, 1
      %p468 = scmp.lt.s32.totalorder %s20, 1
      %s469 = scalar_select %p468, %s20, 1
      %s470 = smul.addr %s469, 2
      %s471 = smul.addr %s467, 4
      %s472 = sadd.s32 %s470, %s471
      %s473 = smul.addr %s472, 8
      %s474 = scalar_lea.vmem %s4, %s473
      // Predicated region
      $region37: #{ps_block_forward.2} parent=35 // pred_check
        %p475 = pneg %p143
      $region38: #{ps_block_forward.2} parent=35 // pred_check_branch
        %477 = sbr.rel (%p475) target = $region40
      $region39: #{ps_block_forward.2} parent=35 // pred_region
        _
      $region40: #{ps_block_forward.2} parent=35 // pred_fallthru
        _
    $region36: #{ps_block_forward.2} parent=5 // pred_fallthru
      _
    %p478 = scmp.le.s32.totalorder 2, %s10
    // Predicated region
    $region41: #{ps_block_forward.2} parent=5 // pred_check
      %p479 = pneg %p478
    $region42: #{ps_block_forward.2} parent=5 // pred_check_branch
      %481 = sbr.rel (%p479) target = $region44
    $region43: #{ps_block_forward.2} parent=5 // pred_region
      %s482 = ssub.s32 %s10, 2
      // Predicated region
      $region45: #{ps_block_forward.2} parent=43 // pred_check
        %p483 = pneg %p149
      $region46: #{ps_block_forward.2} parent=43 // pred_check_branch
        %485 = sbr.rel (%p483) target = $region48
      $region47: #{ps_block_forward.2} parent=43 // pred_region
        %p486 = scmp.lt.s32.totalorder %s21, 1
        %s487 = scalar_select %p486, %s21, 1
        %p488 = scmp.lt.s32.totalorder %s22, 1
        %s489 = scalar_select %p488, %s22, 1
        %s490 = smul.addr %s489, 2
        %s491 = smul.addr %s487, 4
        %s492 = sadd.s32 %s490, %s491
        %s493 = smul.addr %s492, 8
        %s494 = scalar_lea.vmem %s4, %s493
      $region48: #{ps_block_forward.2} parent=43 // pred_fallthru
        _
    $region44: #{ps_block_forward.2} parent=5 // pred_fallthru
      _
  $region6: #{ps_block_forward.2} parent=0 // loop_footer
    %s14 = sadd.s32 1, %s10
  $region7: #{ps_block_forward.2} parent=0 // loop_footer_branch
    %9 = sbr.rel target = $region3
  $region8: #{ps_block_forward.2} parent=0 // loop_exit
    _

// kernel: ps_block_forward.3
$region0: #{ps_block_forward.3}
  #allocation0 [shape = 'u32[]', space=smem, size = 0x4, offset = 0x4, fixed_abs, tag = 'smem constant byte address 0x4 - core index']
  #allocation1 [shape = 'u32[72,128]{1,0:T(1,128)}', space=vmem, size = 0x9000, scoped, tag = 'internal scratch']
  #allocation2 [shape = 'f32[1]{0:T(128)S(6)}', space=smem, size = 0x200, scoped, tag = 'scoped memory for ps_block_forward.3']
  %s0 = inlined_call_operand.vmem [shape: bf16[2,2,4,216], index: 0, kind: input, shape index: {}]
  %s1 = inlined_call_operand.vmem [shape: f32[16,36], index: 1, kind: input, shape index: {}]
  %s2 = inlined_call_operand.vmem [shape: f32[16,1], index: 2, kind: input, shape index: {}]
  %s3 = inlined_call_operand.vmem [shape: f32[16,1], index: 3, kind: input, shape index: {}]
  %s4 = inlined_call_operand.<no memory space> [shape: f32[1], index: 4, kind: input, shape index: {}]
  %s5 = inlined_call_operand.vmem [shape: bf16[2,2,16,162], index: 5, kind: output, shape index: {}]
  %s6 = sld [smem:[#allocation0]]
  $region53: #{ps_block_forward.3} parent=0
    _
  %s8 = ssub.s32 1, %s6
  %s9 = scalar_select 0, %s8, %s6
  %10 = sst [smem:[#allocation2]] %s4
  loop: start=0, step=1, limit=6
  $region2: #{ps_block_forward.3} parent=0 // loop_pre_header
    _
  $region3: #{ps_block_forward.3} parent=0 // loop_header
    %s12 = sphi 0, %s16
    %p13 = scmp.ge.s32.totalorder %s12, 6
    %s19 = sphi 0, %s31
    %s20 = sphi 0, %s27
    %s21 = sphi 0, %s19
    %s22 = sphi 0, %s20
    %s23 = sphi 0, %s21
    %s24 = sphi 0, %s22
    %s36 = sphi 0, %s38
    %s39 = sphi 0, %s36
    %s40 = sphi 0, %s39
    %s56 = sphi 0, %s40
    %s60 = sphi 0, %s60
    %s62 = sphi 0, %s60
    %s63 = sphi 0, %s62
    %s77 = sphi 0, %s63
    %s81 = sphi 0, %s81
    %s83 = sphi 0, %s81
    %s84 = sphi 0, %s83
    %s98 = sphi 0, %s84
    %s102 = sphi 0, %s102
    %s104 = sphi 0, %s102
    %s105 = sphi 0, %s104
    %s119 = sphi 0, %s105
    %s123 = sphi 0, %s123
    %s125 = sphi 0, %s123
    %s126 = sphi 0, %s125
    %s140 = sphi 0, %s126
    %s148 = sphi 0, %s150
    %s151 = sphi 0, %s148
    %s152 = sphi 0, %s151
    %s168 = sphi 0, %s152
  $region4: #{ps_block_forward.3} parent=0 // loop_header_branch
    %15 = sbr.rel (%p13) target = $region8
  $region5: #{ps_block_forward.3} parent=0 // loop_body
    %s17 = ssub.s32 %s12, 1
    %s18 = ssub.s32 %s12, 2
    %s25 = sadd.s32 1, %s20
    %p26 = scmp.ge.s32.totalorder %s25, 2
    %s27 = scalar_select %p26, 0, %s25
    %s28 = sadd.s32 1, %s19
    %s29 = scalar_select %p26, %s28, %s19
    %p30 = scmp.ge.s32.totalorder %s29, 2
    %s31 = scalar_select %p30, 0, %s29
    %s32 = ssub.s32 %s19, %s31
    %s33 = ssub.s32 %s20, %s27
    %s34 = sor.u32 %s32, %s33
    %p35 = scmp.eq.s32.totalorder %s34, 0
    %s37 = sadd.s32 %s36, 1
    %s38 = scalar_select %p35, %s36, %s37
    %p41 = pneg %p35
    %p42 = scmp.eq.s32.totalorder %s12, 3
    %p43 = por %p41, %p42
    %p44 = scmp.ne.s32.totalorder %s36, %s39
    %p45 = scmp.eq.s32.totalorder %s12, 0
    %p46 = por %p44, %p45
    %p47 = scmp.ne.s32.totalorder %s36, %s39
    %p48 = scmp.eq.s32.totalorder %s17, 3
    %p49 = por %p47, %p48
    %p50 = scmp.ne.s32.totalorder %s39, %s40
    %p51 = scmp.eq.s32.totalorder %s17, 0
    %p52 = por %p50, %p51
    %p53 = scmp.ne.s32.totalorder %s39, %s40
    %p54 = scmp.eq.s32.totalorder %s18, 3
    %p55 = por %p53, %p54
    %p57 = scmp.ne.s32.totalorder %s40, %s56
    %p58 = scmp.eq.s32.totalorder %s18, 0
    %p59 = por %p57, %p58
    %s61 = sadd.s32 %s60, 1
    %p64 = scmp.eq.s32.totalorder %s12, 3
    %p65 = scmp.ne.s32.totalorder %s60, %s62
    %p66 = scmp.eq.s32.totalorder %s12, 0
    %p67 = por %p65, %p66
    %p68 = scmp.ne.s32.totalorder %s60, %s62
    %p69 = scmp.eq.s32.totalorder %s17, 3
    %p70 = por %p68, %p69
    %p71 = scmp.ne.s32.totalorder %s62, %s63
    %p72 = scmp.eq.s32.totalorder %s17, 0
    %p73 = por %p71, %p72
    %p74 = scmp.ne.s32.totalorder %s62, %s63
    %p75 = scmp.eq.s32.totalorder %s18, 3
    %p76 = por %p74, %p75
    %p78 = scmp.ne.s32.totalorder %s63, %s77
    %p79 = scmp.eq.s32.totalorder %s18, 0
    %p80 = por %p78, %p79
    %s82 = sadd.s32 %s81, 1
    %p85 = scmp.eq.s32.totalorder %s12, 3
    %p86 = scmp.ne.s32.totalorder %s81, %s83
    %p87 = scmp.eq.s32.totalorder %s12, 0
    %p88 = por %p86, %p87
    %p89 = scmp.ne.s32.totalorder %s81, %s83
    %p90 = scmp.eq.s32.totalorder %s17, 3
    %p91 = por %p89, %p90
    %p92 = scmp.ne.s32.totalorder %s83, %s84
    %p93 = scmp.eq.s32.totalorder %s17, 0
    %p94 = por %p92, %p93
    %p95 = scmp.ne.s32.totalorder %s83, %s84
    %p96 = scmp.eq.s32.totalorder %s18, 3
    %p97 = por %p95, %p96
    %p99 = scmp.ne.s32.totalorder %s84, %s98
    %p100 = scmp.eq.s32.totalorder %s18, 0
    %p101 = por %p99, %p100
    %s103 = sadd.s32 %s102, 1
    %p106 = scmp.eq.s32.totalorder %s12, 3
    %p107 = scmp.ne.s32.totalorder %s102, %s104
    %p108 = scmp.eq.s32.totalorder %s12, 0
    %p109 = por %p107, %p108
    %p110 = scmp.ne.s32.totalorder %s102, %s104
    %p111 = scmp.eq.s32.totalorder %s17, 3
    %p112 = por %p110, %p111
    %p113 = scmp.ne.s32.totalorder %s104, %s105
    %p114 = scmp.eq.s32.totalorder %s17, 0
    %p115 = por %p113, %p114
    %p116 = scmp.ne.s32.totalorder %s104, %s105
    %p117 = scmp.eq.s32.totalorder %s18, 3
    %p118 = por %p116, %p117
    %p120 = scmp.ne.s32.totalorder %s105, %s119
    %p121 = scmp.eq.s32.totalorder %s18, 0
    %p122 = por %p120, %p121
    %s124 = sadd.s32 %s123, 1
    %p127 = scmp.eq.s32.totalorder %s12, 3
    %p128 = scmp.ne.s32.totalorder %s123, %s125
    %p129 = scmp.eq.s32.totalorder %s12, 0
    %p130 = por %p128, %p129
    %p131 = scmp.ne.s32.totalorder %s123, %s125
    %p132 = scmp.eq.s32.totalorder %s17, 3
    %p133 = por %p131, %p132
    %p134 = scmp.ne.s32.totalorder %s125, %s126
    %p135 = scmp.eq.s32.totalorder %s17, 0
    %p136 = por %p134, %p135
    %p137 = scmp.ne.s32.totalorder %s125, %s126
    %p138 = scmp.eq.s32.totalorder %s18, 3
    %p139 = por %p137, %p138
    %p141 = scmp.ne.s32.totalorder %s126, %s140
    %p142 = scmp.eq.s32.totalorder %s18, 0
    %p143 = por %p141, %p142
    %s144 = ssub.s32 %s19, %s31
    %s145 = ssub.s32 %s20, %s27
    %s146 = sor.u32 %s144, %s145
    %p147 = scmp.eq.s32.totalorder %s146, 0
    %s149 = sadd.s32 %s148, 1
    %s150 = scalar_select %p147, %s148, %s149
    %p153 = pneg %p147
    %p154 = scmp.eq.s32.totalorder %s12, 3
    %p155 = por %p153, %p154
    %p156 = scmp.ne.s32.totalorder %s148, %s151
    %p157 = scmp.eq.s32.totalorder %s12, 0
    %p158 = por %p156, %p157
    %p159 = scmp.ne.s32.totalorder %s148, %s151
    %p160 = scmp.eq.s32.totalorder %s17, 3
    %p161 = por %p159, %p160
    %p162 = scmp.ne.s32.totalorder %s151, %s152
    %p163 = scmp.eq.s32.totalorder %s17, 0
    %p164 = por %p162, %p163
    %p165 = scmp.ne.s32.totalorder %s151, %s152
    %p166 = scmp.eq.s32.totalorder %s18, 3
    %p167 = por %p165, %p166
    %p169 = scmp.ne.s32.totalorder %s152, %s168
    %p170 = scmp.eq.s32.totalorder %s18, 0
    %p171 = por %p169, %p170
    %p172 = scmp.le.s32.totalorder 1, %s12
    %p173 = scmp.lt.s32.totalorder %s12, 5
    %p174 = pnand %p172, %p173
    %p175 = pneg %p174
    // Predicated region
    $region9: #{ps_block_forward.3} parent=5 // pred_check
      _
    $region10: #{ps_block_forward.3} parent=5 // pred_check_branch
      %177 = sbr.rel (%p174) target = $region12
    $region11: #{ps_block_forward.3} parent=5 // pred_region
      %s178 = ssub.s32 %s12, 1
      // Predicated region
      $region13: #{ps_block_forward.3} parent=11 // pred_check
        %p179 = pneg %p73
      $region14: #{ps_block_forward.3} parent=11 // pred_check_branch
        %181 = sbr.rel (%p179) target = $region16
      $region15: #{ps_block_forward.3} parent=11 // pred_region
        _
      $region16: #{ps_block_forward.3} parent=11 // pred_fallthru
        _
      // Predicated region
      $region17: #{ps_block_forward.3} parent=11 // pred_check
        %p182 = pneg %p94
      $region18: #{ps_block_forward.3} parent=11 // pred_check_branch
        %184 = sbr.rel (%p182) target = $region20
      $region19: #{ps_block_forward.3} parent=11 // pred_region
        _
      $region20: #{ps_block_forward.3} parent=11 // pred_fallthru
        _
      // Predicated region
      $region21: #{ps_block_forward.3} parent=11 // pred_check
        %p185 = pneg %p115
      $region22: #{ps_block_forward.3} parent=11 // pred_check_branch
        %187 = sbr.rel (%p185) target = $region24
      $region23: #{ps_block_forward.3} parent=11 // pred_region
        _
      $region24: #{ps_block_forward.3} parent=11 // pred_fallthru
        _
      // Predicated region
      $region25: #{ps_block_forward.3} parent=11 // pred_check
        %p188 = pneg %p136
      $region26: #{ps_block_forward.3} parent=11 // pred_check_branch
        %190 = sbr.rel (%p188) target = $region28
      $region27: #{ps_block_forward.3} parent=11 // pred_region
        _
      $region28: #{ps_block_forward.3} parent=11 // pred_fallthru
        _
    $region12: #{ps_block_forward.3} parent=5 // pred_fallthru
      _
    %p191 = scmp.lt.s32.totalorder %s12, 4
    // Predicated region
    $region29: #{ps_block_forward.3} parent=5 // pred_check
      %p192 = pneg %p191
    $region30: #{ps_block_forward.3} parent=5 // pred_check_branch
      %194 = sbr.rel (%p192) target = $region32
    $region31: #{ps_block_forward.3} parent=5 // pred_region
      // Predicated region
      $region33: #{ps_block_forward.3} parent=31 // pred_check
        %p195 = pneg %p46
      $region34: #{ps_block_forward.3} parent=31 // pred_check_branch
        %197 = sbr.rel (%p195) target = $region36
      $region35: #{ps_block_forward.3} parent=31 // pred_region
        %p198 = scmp.lt.s32.totalorder %s19, 1
        %s199 = scalar_select %p198, %s19, 1
        %p200 = scmp.lt.s32.totalorder %s20, 1
        %s201 = scalar_select %p200, %s20, 1
        %s202 = smul.addr %s201, 2
        %s203 = smul.addr %s199, 4
        %s204 = sadd.s32 %s202, %s203
        %s205 = smul.addr %s204, 2
        %s206 = scalar_lea.vmem %s0, %s205
      $region36: #{ps_block_forward.3} parent=31 // pred_fallthru
        _
    $region32: #{ps_block_forward.3} parent=5 // pred_fallthru
      _
    %p207 = scmp.le.s32.totalorder 1, %s12
    %p208 = scmp.lt.s32.totalorder %s12, 5
    %p209 = pnand %p207, %p208
    %p210 = pneg %p209
    // Predicated region
    $region37: #{ps_block_forward.3} parent=5 // pred_check
      _
    $region38: #{ps_block_forward.3} parent=5 // pred_check_branch
      %212 = sbr.rel (%p209) target = $region40
    $region39: #{ps_block_forward.3} parent=5 // pred_region
      %s213 = ssub.s32 %s12, 1
      %p214 = scmp.lt.s32.totalorder %s21, 1
      %s215 = scalar_select %p214, %s21, 1
      %p216 = scmp.lt.s32.totalorder %s22, 1
      %s217 = scalar_select %p216, %s22, 1
      %s218 = smul.addr %s217, 2
      %s219 = smul.addr %s215, 4
      %s220 = sadd.s32 %s218, %s219
      %s221 = smul.addr %s220, 2
      %s222 = scalar_lea.vmem %s0, %s221
      %p223 = pneg %p52
      %p224 = pneg %p49
      %p225 = pneg %p73
      %p226 = pneg %p70
      %p227 = pneg %p94
      %p228 = pneg %p91
      %p229 = pneg %p115
      %p230 = pneg %p112
      %p231 = pneg %p136
      %p232 = pneg %p133
      %p233 = pneg %p164
      %p234 = pneg %p161
      %p235 = scmp.lt.s32.totalorder %s21, 1
      %s236 = scalar_select %p235, %s21, 1
      %p237 = scmp.lt.s32.totalorder %s22, 1
      %s238 = scalar_select %p237, %s22, 1
      %s239 = smul.addr %s238, 4
      %s240 = smul.addr %s236, 8
      %s241 = sadd.s32 %s239, %s240
      %s242 = smul.addr %s241, 4
      %s243 = scalar_lea.vmem %s5, %s242
      %p244 = scmp.lt.s32.totalorder %s21, 1
      %s245 = scalar_select %p244, %s21, 1
      %p246 = scmp.lt.s32.totalorder %s22, 1
      %s247 = scalar_select %p246, %s22, 1
      %s248 = smul.addr %s247, 2
      %s249 = smul.addr %s245, 4
      %s250 = sadd.s32 %s248, %s249
      %s251 = smul.addr %s250, 2
      %s252 = scalar_lea.vmem %s0, %s251
      %p253 = scmp.lt.s32.totalorder %s21, 1
      %s254 = scalar_select %p253, %s21, 1
      %p255 = scmp.lt.s32.totalorder %s22, 1
      %s256 = scalar_select %p255, %s22, 1
      %s257 = smul.addr %s256, 4
      %s258 = smul.addr %s254, 8
      %s259 = sadd.s32 %s257, %s258
      %s260 = smul.addr %s259, 4
      %s261 = scalar_lea.vmem %s5, %s260
      %v262 = vld [vmem:[%s252] sm:$0xf]
      %v263 = vunpack.c.l.bf16 %v262
      %265 = vst [vmem:[#allocation1] ss:$2 sm:$0xff] %v263
      %v266 = vld.sshfl [vmem:[#allocation1] sm:$0xff pattern:$0x75316420]
      %v267 = vld.sshfl [vmem:[#allocation1 + $0x8] sm:$0xff pattern:$0x75316420]
      %s270 = scalar_lea.vmem [#allocation1], 1
      %271 = vst [vmem:[%s270] ss:$2 sm:$0xff] %v263
      %v272 = vld.sshfl [vmem:[#allocation1] sm:$0xff pattern:$0x75316420]
      %v273 = vld.sshfl [vmem:[#allocation1 + $0x8] sm:$0xff pattern:$0x75316420]
      %274 = vrot.lane.b32.xlu0 %v272, 127
      %v275 = vpop.permute.xlu0 %274
      %276 = vrot.lane.b32.xlu0 %v273, 127
      %v277 = vpop.permute.xlu0 %276
      %vm278 = vcmask 1039360
      %v279 = vsel %vm278, %v275, %v277
      %282 = vst [vmem:[#allocation1] ss:$2 sm:$0xff] %v263
      %v283 = vld.sshfl [vmem:[#allocation1] sm:$0xff pattern:$0x75316420]
      %v284 = vld.sshfl [vmem:[#allocation1 + $0x8] sm:$0xff pattern:$0x75316420]
      %285 = vrot.lane.b32.xlu0 %v283, 126
      %v286 = vpop.permute.xlu0 %285
      %287 = vrot.lane.b32.xlu0 %v284, 126
      %v288 = vpop.permute.xlu0 %287
      %vm289 = vcmask 1031168
      %v290 = vsel %vm289, %v286, %v288
      %s293 = scalar_lea.vmem [#allocation1], 1
      %294 = vst [vmem:[%s293] ss:$2 sm:$0xff] %v263
      %v295 = vld.sshfl [vmem:[#allocation1] sm:$0xff pattern:$0x75316420]
      %v296 = vld.sshfl [vmem:[#allocation1 + $0x8] sm:$0xff pattern:$0x75316420]
      %297 = vrot.lane.b32.xlu0 %v295, 110
      %v298 = vpop.permute.xlu0 %297
      %299 = vrot.lane.b32.xlu0 %v296, 110
      %v300 = vpop.permute.xlu0 %299
      %vm301 = vcmask 900096
      %v302 = vsel %vm301, %v298, %v300
      %305 = vst [vmem:[#allocation1] ss:$2 sm:$0xff] %v263
      %v306 = vld.sshfl [vmem:[#allocation1] sm:$0xff pattern:$0x75316420]
      %v307 = vld.sshfl [vmem:[#allocation1 + $0x8] sm:$0xff pattern:$0x75316420]
      %308 = vrot.lane.b32.xlu0 %v306, 109
      %v309 = vpop.permute.xlu0 %308
      %310 = vrot.lane.b32.xlu0 %v307, 109
      %v311 = vpop.permute.xlu0 %310
      %vm312 = vcmask 891904
      %v313 = vsel %vm312, %v309, %v311
      %s316 = scalar_lea.vmem [#allocation1], 1
      %317 = vst [vmem:[%s316] ss:$2 sm:$0xff] %v263
      %v318 = vld.sshfl [vmem:[#allocation1] sm:$0xff pattern:$0x75316420]
      %v319 = vld.sshfl [vmem:[#allocation1 + $0x8] sm:$0xff pattern:$0x75316420]
      %320 = vrot.lane.b32.xlu0 %v318, 108
      %v321 = vpop.permute.xlu0 %320
      %322 = vrot.lane.b32.xlu0 %v319, 108
      %v323 = vpop.permute.xlu0 %322
      %vm324 = vcmask 883712
      %v325 = vsel %vm324, %v321, %v323
      %328 = vst [vmem:[#allocation1] ss:$2 sm:$0xff] %v263
      %v329 = vld.sshfl [vmem:[#allocation1] sm:$0xff pattern:$0x75316420]
      %v330 = vld.sshfl [vmem:[#allocation1 + $0x8] sm:$0xff pattern:$0x75316420]
      %331 = vrot.lane.b32.xlu0 %v329, 92
      %v332 = vpop.permute.xlu0 %331
      %333 = vrot.lane.b32.xlu0 %v330, 92
      %v334 = vpop.permute.xlu0 %333
      %vm335 = vcmask 752640
      %v336 = vsel %vm335, %v332, %v334
      %s339 = scalar_lea.vmem [#allocation1], 1
      %340 = vst [vmem:[%s339] ss:$2 sm:$0xff] %v263
      %v341 = vld.sshfl [vmem:[#allocation1] sm:$0xff pattern:$0x75316420]
      %v342 = vld.sshfl [vmem:[#allocation1 + $0x8] sm:$0xff pattern:$0x75316420]
      %343 = vrot.lane.b32.xlu0 %v341, 91
      %v344 = vpop.permute.xlu0 %343
      %345 = vrot.lane.b32.xlu0 %v342, 91
      %v346 = vpop.permute.xlu0 %345
      %vm347 = vcmask 744448
      %v348 = vsel %vm347, %v344, %v346
      %351 = vst [vmem:[#allocation1] ss:$2 sm:$0xff] %v263
      %v352 = vld.sshfl [vmem:[#allocation1] sm:$0xff pattern:$0x75316420]
      %v353 = vld.sshfl [vmem:[#allocation1 + $0x8] sm:$0xff pattern:$0x75316420]
      %354 = vrot.lane.b32.xlu0 %v352, 90
      %v355 = vpop.permute.xlu0 %354
      %356 = vrot.lane.b32.xlu0 %v353, 90
      %v357 = vpop.permute.xlu0 %356
      %vm358 = vcmask 736256
      %v359 = vsel %vm358, %v355, %v357
      %vm360 = vcmask 1043456
      %v361 = vsel %vm360, %v266, %v279
      %v362 = vsel %vm360, %v267, %v277
      %v363 = vsel %vm360, %v290, %v302
      %v364 = vsel %vm360, %v288, %v300
      %v365 = vsel %vm360, %v313, %v325
      %v366 = vsel %vm360, %v311, %v323
      %v367 = vsel %vm360, %v336, %v348
      %v368 = vsel %vm360, %v334, %v346
      %v369 = vld [vmem:[%s1] sm:$0xff]
      %v370 = vld [vmem:[%s1 + $0x8] sm:$0xff]
      %vm371 = vcmask 293888
      %v373 = vsel %vm371, %v369, 0
      %v376 = vsel %vm371, %v370, 0
      %v378 = vsel %vm360, %v359, 0
      %v380 = vsel %vm360, %v357, 0
      %382 = vmatpush.msra.mxu0 0.0
      %383 = vmatpush.msra.mxu0 0.0
      %384 = vmatpush.msra.mxu0 0.0
      %385 = vmatpush.msra.mxu0 0.0
      %386 = vmatpush.msra.mxu0 0.0
      %387 = vmatpush.msra.mxu0 0.0
      %388 = vmatpush.msra.mxu0 0.0
      %389 = vmatpush.msra.mxu0 0.0
      %390 = vmatpush.msra.mxu0 0.0
      %391 = vmatpush.msra.mxu0 0.0
      %392 = vmatpush.msra.mxu0 0.0
      %393 = vmatpush.msra.mxu0 %v378
      %394 = vmatpush.msra.mxu0 %v367
      %395 = vmatpush.msra.mxu0 %v365
      %396 = vmatpush.msra.mxu0 %v363
      %397 = vmatpush.msra.mxu0 %v361
      %398 = vmatmul.f32.gmra.mxu0 %v373
      %v399 = vpop.f32.mrf.mxu0
      %v400 = vadd.f32 0.0, %v399
      %401 = vmatmul.f32.gmra.mxu0 %v376
      %v402 = vpop.f32.mrf.mxu0
      %v403 = vadd.f32 0.0, %v402
      %404 = vdwg.mxu0
      %405 = vmatpush.msra.mxu0 0.0
      %406 = vmatpush.msra.mxu0 0.0
      %407 = vmatpush.msra.mxu0 0.0
      %408 = vmatpush.msra.mxu0 0.0
      %409 = vmatpush.msra.mxu0 0.0
      %410 = vmatpush.msra.mxu0 0.0
      %411 = vmatpush.msra.mxu0 0.0
      %412 = vmatpush.msra.mxu0 0.0
      %413 = vmatpush.msra.mxu0 0.0
      %414 = vmatpush.msra.mxu0 0.0
      %415 = vmatpush.msra.mxu0 0.0
      %416 = vmatpush.msra.mxu0 %v380
      %417 = vmatpush.msra.mxu0 %v368
      %418 = vmatpush.msra.mxu0 %v366
      %419 = vmatpush.msra.mxu0 %v364
      %420 = vmatpush.msra.mxu0 %v362
      %421 = vmatmul.f32.gmra.mxu0 %v373
      %v422 = vpop.f32.mrf.mxu0
      %v423 = vadd.f32 0.0, %v422
      %424 = vmatmul.f32.gmra.mxu0 %v376
      %v425 = vpop.f32.mrf.mxu0
      %v426 = vadd.f32 0.0, %v425
      %427 = vdwg.mxu0
      %v428 = vld [vmem:[%s2] sm:$0xff]
      %v429 = vld [vmem:[%s2 + $0x8] sm:$0xff]
      %431 = vset.pattern.permute.xlu0 0
      %432 = vperm.xlu0 %431, %v428
      %v433 = vpop.permute.xlu0 %432
      %436 = vset.pattern.permute.xlu0 0
      %437 = vperm.xlu0 %436, %v429
      %v438 = vpop.permute.xlu0 %437
      %v440 = vmul.f32 %v400, %v433
      %v441 = vmul.f32 %v423, %v433
      %v442 = vmul.f32 %v403, %v438
      %v443 = vmul.f32 %v426, %v438
      %v444 = vld [vmem:[%s3] sm:$0xff]
      %v445 = vld [vmem:[%s3 + $0x8] sm:$0xff]
      %447 = vset.pattern.permute.xlu0 0
      %448 = vperm.xlu0 %447, %v444
      %v449 = vpop.permute.xlu0 %448
      %452 = vset.pattern.permute.xlu0 0
      %453 = vperm.xlu0 %452, %v445
      %v454 = vpop.permute.xlu0 %453
      %v456 = vadd.f32 %v440, %v449
      %v457 = vadd.f32 %v441, %v449
      %v458 = vadd.f32 %v442, %v454
      %v459 = vadd.f32 %v443, %v454
      %s460 = sld [smem:[#allocation2]]
      %vm461 = vcmp.gt.f32.partialorder %v456, 0.0
      %vm462 = vcmp.gt.f32.partialorder %v457, 0.0
      %vm463 = vcmp.gt.f32.partialorder %v458, 0.0
      %vm464 = vcmp.gt.f32.partialorder %v459, 0.0
      %v465 = vstv %s460
      %v466 = vmul.f32 %v465, %v456
      %v467 = vmul.f32 %v465, %v457
      %v468 = vmul.f32 %v465, %v458
      %v469 = vmul.f32 %v465, %v459
      %v470 = vsel %vm461, %v456, %v466
      %v471 = vsel %vm462, %v457, %v467
      %v472 = vsel %vm463, %v458, %v468
      %v473 = vsel %vm464, %v459, %v469
      %v474 = vpack.c.bf16 %v471, %v470
      %v475 = vpack.c.bf16 %v473, %v472
      %vm476 = vcmask 277508
      %vm477 = vmor %vm476, %vm360
      %478 = vst.msk [vmem:[%s261] sm:$0xff] %vm477, %v474
      %479 = vst.msk [vmem:[%s261 + $0x8] sm:$0xff] %vm477, %v475
      %p480 = scmp.lt.s32.totalorder %s21, 1
      %s481 = scalar_select %p480, %s21, 1
      %p482 = scmp.lt.s32.totalorder %s22, 1
      %s483 = scalar_select %p482, %s22, 1
      %s484 = smul.addr %s483, 4
      %s485 = smul.addr %s481, 8
      %s486 = sadd.s32 %s484, %s485
      %s487 = smul.addr %s486, 4
      %s488 = scalar_lea.vmem %s5, %s487
      // Predicated region
      $region41: #{ps_block_forward.3} parent=39 // pred_check
        %p489 = pneg %p161
      $region42: #{ps_block_forward.3} parent=39 // pred_check_branch
        %491 = sbr.rel (%p489) target = $region44
      $region43: #{ps_block_forward.3} parent=39 // pred_region
        _
      $region44: #{ps_block_forward.3} parent=39 // pred_fallthru
        _
    $region40: #{ps_block_forward.3} parent=5 // pred_fallthru
      _
    %p492 = scmp.le.s32.totalorder 2, %s12
    // Predicated region
    $region45: #{ps_block_forward.3} parent=5 // pred_check
      %p493 = pneg %p492
    $region46: #{ps_block_forward.3} parent=5 // pred_check_branch
      %495 = sbr.rel (%p493) target = $region48
    $region47: #{ps_block_forward.3} parent=5 // pred_region
      %s496 = ssub.s32 %s12, 2
      // Predicated region
      $region49: #{ps_block_forward.3} parent=47 // pred_check
        %p497 = pneg %p167
      $region50: #{ps_block_forward.3} parent=47 // pred_check_branch
        %499 = sbr.rel (%p497) target = $region52
      $region51: #{ps_block_forward.3} parent=47 // pred_region
        %p500 = scmp.lt.s32.totalorder %s23, 1
        %s501 = scalar_select %p500, %s23, 1
        %p502 = scmp.lt.s32.totalorder %s24, 1
        %s503 = scalar_select %p502, %s24, 1
        %s504 = smul.addr %s503, 4
        %s505 = smul.addr %s501, 8
        %s506 = sadd.s32 %s504, %s505
        %s507 = smul.addr %s506, 4
        %s508 = scalar_lea.vmem %s5, %s507
      $region52: #{ps_block_forward.3} parent=47 // pred_fallthru
        _
    $region48: #{ps_block_forward.3} parent=5 // pred_fallthru
      _
  $region6: #{ps_block_forward.3} parent=0 // loop_footer
    %s16 = sadd.s32 1, %s12
  $region7: #{ps_block_forward.3} parent=0 // loop_footer_branch
    %11 = sbr.rel target = $region3
  $region8: #{ps_block_forward.3} parent=0 // loop_exit
    _

</llo_original>
